<compile_context>
chip_gen: v7x
topology: tpu7x:2x2x1
jax: 0.10.0
libtpu: 0.0.40
codegen_flags: <defaults>
</compile_context>

<pallas_src>
import jax
import jax.numpy as jnp
from jax.experimental import pallas as pl
from jax.experimental.pallas import tpu as pltpu

LANE = 128  # vreg lane width; all feature dims are padded up to this.


def _mlp_kernel(x_ref, w1_ref, b1_ref, w2_ref, b2_ref,
                w3_ref, b3_ref, w4_ref, b4_ref, o_ref):
    # Hoisted bias loads (f32, lane-dense (1, 128) rows).
    b1 = b1_ref[...]
    b2 = b2_ref[...]
    b3 = b3_ref[...]
    b4 = b4_ref[...]

    h = x_ref[...]                                    # (TILE_B, C_in) bf16
    # conv1 (1x1 Conv1d == channel matmul) + ReLU; max_pool2d(k=1,s=1) is identity.
    h = jnp.maximum(
        jnp.dot(h, w1_ref[...], preferred_element_type=jnp.float32) + b1, 0.0)
    # conv2 + ReLU (+ identity pool).
    h = jnp.maximum(
        jnp.dot(h.astype(jnp.bfloat16), w2_ref[...],
                preferred_element_type=jnp.float32) + b2, 0.0)
    # fc1 + ReLU.
    h = jnp.maximum(
        jnp.dot(h.astype(jnp.bfloat16), w3_ref[...],
                preferred_element_type=jnp.float32) + b3, 0.0)
    # out + ReLU (the module really does clamp its final output at 0).
    h = jnp.maximum(
        jnp.dot(h.astype(jnp.bfloat16), w4_ref[...],
                preferred_element_type=jnp.float32) + b4, 0.0)
    o_ref[...] = h.astype(o_ref.dtype)                # (TILE_B, 128) lane-dense store


def _pad2d(a, rows, cols):
    return jnp.pad(a, ((0, rows - a.shape[0]), (0, cols - a.shape[1])))


def cnn_discriminator_forward(x_ncl, params, tile_b=1024):
    """x_ncl: (N, input_size, 1) float32, NCL layout like the PyTorch Conv1d input."""
    n, c_in, length = x_ncl.shape
    assert length == 1, "module's reshape(-1, 10) implies sequence length 1"

    w1, b1, w2, b2, w3, b3, w4, b4 = params
    out_dim = w4.shape[1]

    # --- lane-dense padding of weights / biases (zero pad keeps semantics) ---
    w1p = _pad2d(w1, c_in, LANE).astype(jnp.bfloat16)
    w2p = _pad2d(w2, LANE, LANE).astype(jnp.bfloat16)
    w3p = _pad2d(w3, LANE, LANE).astype(jnp.bfloat16)
    w4p = _pad2d(w4, LANE, LANE).astype(jnp.bfloat16)
    b1p = _pad2d(b1, 1, LANE).astype(jnp.float32)
    b2p = _pad2d(b2, 1, LANE).astype(jnp.float32)
    b3p = _pad2d(b3, 1, LANE).astype(jnp.float32)
    b4p = _pad2d(b4, 1, LANE).astype(jnp.float32)

    # --- batch tiling: TILE_B rows per grid step, bf16 input slab ---
    tile_b = max(8, min(tile_b, ((n + 7) // 8) * 8))          # multiple of 8 sublanes
    n_pad = ((n + tile_b - 1) // tile_b) * tile_b
    x2d = x_ncl.reshape(n, c_in).astype(jnp.bfloat16)         # squeeze L, halve HBM bytes
    if n_pad != n:
        x2d = jnp.pad(x2d, ((0, n_pad - n), (0, 0)))

    grid = (n_pad // tile_b,)

    resident = lambda shape: pl.BlockSpec(shape, lambda i: (0, 0))  # stays in VMEM

    y_pad = pl.pallas_call(
        _mlp_kernel,
        out_shape=jax.ShapeDtypeStruct((n_pad, LANE), jnp.float32),
        grid=grid,
        in_specs=[
            pl.BlockSpec((tile_b, c_in), lambda i: (i, 0)),   # x: tiled over batch
            resident((c_in, LANE)), resident((1, LANE)),      # w1, b1
            resident((LANE, LANE)), resident((1, LANE)),      # w2, b2
            resident((LANE, LANE)), resident((1, LANE)),      # w3, b3
            resident((LANE, LANE)), resident((1, LANE)),      # w4, b4
        ],
        out_specs=pl.BlockSpec((tile_b, LANE), lambda i: (i, 0)),
        compiler_params=pltpu.CompilerParams(
            dimension_semantics=("parallel",),                # megacore-shard on v7x
        ),
    )(x2d, w1p, b1p, w2p, b2p, w3p, b3p, w4p, b4p)

    return y_pad[:n, :out_dim]


def init_params(key, input_size, output_size=1):
    """Deterministic init mirroring the PyTorch layer shapes.

    conv1: Conv1d(input_size, 5, k=1)  -> weight (5, input_size, 1), bias (5,)
    conv2: Conv1d(5, 10, k=1)          -> weight (10, 5, 1),         bias (10,)
    fc1:   Linear(10, 120)             -> weight (120, 10),          bias (120,)
    out:   Linear(120, output_size)    -> weight (out, 120),         bias (out,)

    Stored as (in, out) matmul-ready matrices + (1, out) biases.
    """
    ks = jax.random.split(key, 8)

    def uni(k, shape, fan_in):
        bound = 1.0 / jnp.sqrt(float(fan_in))
        return jax.random.uniform(k, shape, jnp.float32, -bound, bound)

    w1 = uni(ks[0], (input_size, 5), input_size)   # conv1 weight, transposed to (in, out)
    b1 = uni(ks[1], (1, 5), input_size)
    w2 = uni(ks[2], (5, 10), 5)                    # conv2 weight, transposed
    b2 = uni(ks[3], (1, 10), 5)
    w3 = uni(ks[4], (10, 120), 10)                 # fc1 weight, transposed
    b3 = uni(ks[5], (1, 120), 10)
    w4 = uni(ks[6], (120, output_size), 120)       # out weight, transposed
    b4 = uni(ks[7], (1, output_size), 120)
    return (w1, b1, w2, b2, w3, b3, w4, b4)


def reference_forward(x_ncl, params):
    """Pure-JAX f32 reference mirroring the PyTorch forward exactly."""
    w1, b1, w2, b2, w3, b3, w4, b4 = params
    n = x_ncl.shape[0]
    x = x_ncl.reshape(n, -1)                         # (N, C_in) since L == 1
    h = jnp.maximum(x @ w1 + b1, 0.0)                # conv1 + relu (+ identity pool)
    h = jnp.maximum(h @ w2 + b2, 0.0)                # conv2 + relu (+ identity pool)
    h = h.reshape(-1, 10)                            # t.reshape(-1, 10*1*1)
    h = jnp.maximum(h @ w3 + b3, 0.0)                # fc1 + relu
    h = jnp.maximum(h @ w4 + b4, 0.0)                # out + relu
    return h


if __name__ == "__main__":
    batch = 2
    input_size = 4
    output_size = 1

    key = jax.random.PRNGKey(0)
    k_x, k_p, k_x2 = jax.random.split(key, 3)

    # PyTorch Conv1d input layout: (N, C, L) with L = 1.
    x = jax.random.normal(k_x, (batch, input_size, 1), dtype=jnp.float32)
    params = init_params(k_p, input_size, output_size)

    # Single-tile path.
    y = cnn_discriminator_forward(x, params)
    jax.block_until_ready(y)
    y_ref = reference_forward(x, params)
    assert y.shape == (batch, output_size)
    # bf16 input/weight transport => loosened tolerance vs the f32 reference.
    assert jnp.allclose(y, y_ref, atol=5e-2, rtol=5e-2)

    # Multi-tile path (exercises the batch grid + index maps, still small).
    x_big = jax.random.normal(k_x2, (32, input_size, 1), dtype=jnp.float32)
    y_big = cnn_discriminator_forward(x_big, params, tile_b=8)
    jax.block_until_ready(y_big)
    y_big_ref = reference_forward(x_big, params)
    assert y_big.shape == (32, output_size)
    assert jnp.allclose(y_big, y_big_ref, atol=5e-2, rtol=5e-2)

    print("KERNEL_OK")
</pallas_src>

<mosaic_0001>
module attributes {stable_mosaic.version = 11 : i64} {
  func.func @_mlp_kernel(%arg0: i32, %arg1: memref<8x4xbf16, #tpu.memory_space<vmem>>, %arg2: memref<4x128xbf16, #tpu.memory_space<vmem>>, %arg3: memref<1x128xf32, #tpu.memory_space<vmem>>, %arg4: memref<128x128xbf16, #tpu.memory_space<vmem>>, %arg5: memref<1x128xf32, #tpu.memory_space<vmem>>, %arg6: memref<128x128xbf16, #tpu.memory_space<vmem>>, %arg7: memref<1x128xf32, #tpu.memory_space<vmem>>, %arg8: memref<128x128xbf16, #tpu.memory_space<vmem>>, %arg9: memref<1x128xf32, #tpu.memory_space<vmem>>, %arg10: memref<8x128xf32, #tpu.memory_space<vmem>>) attributes {dimension_semantics = [#tpu.dimension_semantics<parallel>], iteration_bounds = array<i64: 1>, scalar_prefetch = 0 : i64, scratch_operands = 0 : i64, tpu.core_type = #tpu.core_type<tc>, window_params = [{transform_indices = @transform_0, window_bounds = array<i64: 8, 4>}, {pipeline_mode = #tpu.pipeline_mode<synchronous>, transform_indices = @transform_1, window_bounds = array<i64: 4, 128>}, {pipeline_mode = #tpu.pipeline_mode<synchronous>, transform_indices = @transform_2, window_bounds = array<i64: 1, 128>}, {pipeline_mode = #tpu.pipeline_mode<synchronous>, transform_indices = @transform_3, window_bounds = array<i64: 128, 128>}, {pipeline_mode = #tpu.pipeline_mode<synchronous>, transform_indices = @transform_4, window_bounds = array<i64: 1, 128>}, {pipeline_mode = #tpu.pipeline_mode<synchronous>, transform_indices = @transform_5, window_bounds = array<i64: 128, 128>}, {pipeline_mode = #tpu.pipeline_mode<synchronous>, transform_indices = @transform_6, window_bounds = array<i64: 1, 128>}, {pipeline_mode = #tpu.pipeline_mode<synchronous>, transform_indices = @transform_7, window_bounds = array<i64: 128, 128>}, {pipeline_mode = #tpu.pipeline_mode<synchronous>, transform_indices = @transform_8, window_bounds = array<i64: 1, 128>}, {transform_indices = @transform_9, window_bounds = array<i64: 8, 128>}]} {
    %c0 = arith.constant 0 : index
    %c0_0 = arith.constant 0 : index
    %0 = vector.load %arg3[%c0, %c0_0] : memref<1x128xf32, #tpu.memory_space<vmem>>, vector<1x128xf32>
    %c0_1 = arith.constant 0 : index
    %c0_2 = arith.constant 0 : index
    %1 = vector.load %arg5[%c0_1, %c0_2] : memref<1x128xf32, #tpu.memory_space<vmem>>, vector<1x128xf32>
    %c0_3 = arith.constant 0 : index
    %c0_4 = arith.constant 0 : index
    %2 = vector.load %arg7[%c0_3, %c0_4] : memref<1x128xf32, #tpu.memory_space<vmem>>, vector<1x128xf32>
    %c0_5 = arith.constant 0 : index
    %c0_6 = arith.constant 0 : index
    %3 = vector.load %arg9[%c0_5, %c0_6] : memref<1x128xf32, #tpu.memory_space<vmem>>, vector<1x128xf32>
    %c0_7 = arith.constant 0 : index
    %c0_8 = arith.constant 0 : index
    %4 = vector.load %arg1[%c0_7, %c0_8] : memref<8x4xbf16, #tpu.memory_space<vmem>>, vector<8x4xbf16>
    %c0_9 = arith.constant 0 : index
    %c0_10 = arith.constant 0 : index
    %5 = vector.load %arg2[%c0_9, %c0_10] : memref<4x128xbf16, #tpu.memory_space<vmem>>, vector<4x128xbf16>
    %cst = arith.constant dense<0.000000e+00> : vector<8x128xf32>
    %6 = tpu.matmul %4, %5, %cst {dimension_numbers = #tpu.dot_dimension_numbers<[1], [0], [0], [1], [0, 0, 1, 1], [], []>} : vector<8x4xbf16>, vector<4x128xbf16>, vector<8x128xf32> -> vector<8x128xf32>
    %7 = vector.broadcast %0 : vector<1x128xf32> to vector<8x128xf32>
    %8 = arith.addf %6, %7 : vector<8x128xf32>
    %cst_11 = arith.constant 0.000000e+00 : f32
    %9 = vector.broadcast %cst_11 : f32 to vector<8x128xf32>
    %10 = arith.maximumf %8, %9 : vector<8x128xf32>
    %11 = arith.truncf %10 : vector<8x128xf32> to vector<8x128xbf16>
    %c0_12 = arith.constant 0 : index
    %c0_13 = arith.constant 0 : index
    %12 = vector.load %arg4[%c0_12, %c0_13] : memref<128x128xbf16, #tpu.memory_space<vmem>>, vector<128x128xbf16>
    %cst_14 = arith.constant dense<0.000000e+00> : vector<8x128xf32>
    %13 = tpu.matmul %11, %12, %cst_14 {dimension_numbers = #tpu.dot_dimension_numbers<[1], [0], [0], [1], [0, 0, 1, 1], [], []>} : vector<8x128xbf16>, vector<128x128xbf16>, vector<8x128xf32> -> vector<8x128xf32>
    %14 = vector.broadcast %1 : vector<1x128xf32> to vector<8x128xf32>
    %15 = arith.addf %13, %14 : vector<8x128xf32>
    %cst_15 = arith.constant 0.000000e+00 : f32
    %16 = vector.broadcast %cst_15 : f32 to vector<8x128xf32>
    %17 = arith.maximumf %15, %16 : vector<8x128xf32>
    %18 = arith.truncf %17 : vector<8x128xf32> to vector<8x128xbf16>
    %c0_16 = arith.constant 0 : index
    %c0_17 = arith.constant 0 : index
    %19 = vector.load %arg6[%c0_16, %c0_17] : memref<128x128xbf16, #tpu.memory_space<vmem>>, vector<128x128xbf16>
    %cst_18 = arith.constant dense<0.000000e+00> : vector<8x128xf32>
    %20 = tpu.matmul %18, %19, %cst_18 {dimension_numbers = #tpu.dot_dimension_numbers<[1], [0], [0], [1], [0, 0, 1, 1], [], []>} : vector<8x128xbf16>, vector<128x128xbf16>, vector<8x128xf32> -> vector<8x128xf32>
    %21 = vector.broadcast %2 : vector<1x128xf32> to vector<8x128xf32>
    %22 = arith.addf %20, %21 : vector<8x128xf32>
    %cst_19 = arith.constant 0.000000e+00 : f32
    %23 = vector.broadcast %cst_19 : f32 to vector<8x128xf32>
    %24 = arith.maximumf %22, %23 : vector<8x128xf32>
    %25 = arith.truncf %24 : vector<8x128xf32> to vector<8x128xbf16>
    %c0_20 = arith.constant 0 : index
    %c0_21 = arith.constant 0 : index
    %26 = vector.load %arg8[%c0_20, %c0_21] : memref<128x128xbf16, #tpu.memory_space<vmem>>, vector<128x128xbf16>
    %cst_22 = arith.constant dense<0.000000e+00> : vector<8x128xf32>
    %27 = tpu.matmul %25, %26, %cst_22 {dimension_numbers = #tpu.dot_dimension_numbers<[1], [0], [0], [1], [0, 0, 1, 1], [], []>} : vector<8x128xbf16>, vector<128x128xbf16>, vector<8x128xf32> -> vector<8x128xf32>
    %28 = vector.broadcast %3 : vector<1x128xf32> to vector<8x128xf32>
    %29 = arith.addf %27, %28 : vector<8x128xf32>
    %cst_23 = arith.constant 0.000000e+00 : f32
    %30 = vector.broadcast %cst_23 : f32 to vector<8x128xf32>
    %31 = arith.maximumf %29, %30 : vector<8x128xf32>
    %c0_24 = arith.constant 0 : index
    %c0_25 = arith.constant 0 : index
    %32 = vector.load %arg10[%c0_24, %c0_25] : memref<8x128xf32, #tpu.memory_space<vmem>>, vector<8x128xf32>
    tpu.vector_store %arg10[%c0_24, %c0_25], %31 {strides = array<i32>} : memref<8x128xf32, #tpu.memory_space<vmem>>, vector<8x128xf32>,
    return
  }
  func.func @transform_0(%arg0: i32) -> (i32, i32) {
    %c0_i32 = arith.constant 0 : i32
    %c0_i32_0 = arith.constant 0 : i32
    return %arg0, %c0_i32 : i32, i32
  }
  func.func @transform_1(%arg0: i32) -> (i32, i32) {
    %c0_i32 = arith.constant 0 : i32
    %c0_i32_0 = arith.constant 0 : i32
    %c0_i32_1 = arith.constant 0 : i32
    return %c0_i32, %c0_i32_0 : i32, i32
  }
  func.func @transform_2(%arg0: i32) -> (i32, i32) {
    %c0_i32 = arith.constant 0 : i32
    %c0_i32_0 = arith.constant 0 : i32
    %c0_i32_1 = arith.constant 0 : i32
    return %c0_i32, %c0_i32_0 : i32, i32
  }
  func.func @transform_3(%arg0: i32) -> (i32, i32) {
    %c0_i32 = arith.constant 0 : i32
    %c0_i32_0 = arith.constant 0 : i32
    %c0_i32_1 = arith.constant 0 : i32
    return %c0_i32, %c0_i32_0 : i32, i32
  }
  func.func @transform_4(%arg0: i32) -> (i32, i32) {
    %c0_i32 = arith.constant 0 : i32
    %c0_i32_0 = arith.constant 0 : i32
    %c0_i32_1 = arith.constant 0 : i32
    return %c0_i32, %c0_i32_0 : i32, i32
  }
  func.func @transform_5(%arg0: i32) -> (i32, i32) {
    %c0_i32 = arith.constant 0 : i32
    %c0_i32_0 = arith.constant 0 : i32
    %c0_i32_1 = arith.constant 0 : i32
    return %c0_i32, %c0_i32_0 : i32, i32
  }
  func.func @transform_6(%arg0: i32) -> (i32, i32) {
    %c0_i32 = arith.constant 0 : i32
    %c0_i32_0 = arith.constant 0 : i32
    %c0_i32_1 = arith.constant 0 : i32
    return %c0_i32, %c0_i32_0 : i32, i32
  }
  func.func @transform_7(%arg0: i32) -> (i32, i32) {
    %c0_i32 = arith.constant 0 : i32
    %c0_i32_0 = arith.constant 0 : i32
    %c0_i32_1 = arith.constant 0 : i32
    return %c0_i32, %c0_i32_0 : i32, i32
  }
  func.func @transform_8(%arg0: i32) -> (i32, i32) {
    %c0_i32 = arith.constant 0 : i32
    %c0_i32_0 = arith.constant 0 : i32
    %c0_i32_1 = arith.constant 0 : i32
    return %c0_i32, %c0_i32_0 : i32, i32
  }
  func.func @transform_9(%arg0: i32) -> (i32, i32) {
    %c0_i32 = arith.constant 0 : i32
    %c0_i32_0 = arith.constant 0 : i32
    return %arg0, %c0_i32 : i32, i32
  }
}

</mosaic_0001>

<llo_original>
// kernel: tpu_custom_call.1
$region0: #{tpu_custom_call.1}
  #allocation0 [shape = 'u32[]', space=smem, size = 0x4, offset = 0x4, fixed_abs, tag = 'smem constant byte address 0x4 - core index']
  #allocation1 [shape = 'u32[144,128]{1,0:T(1,128)}', space=vmem, size = 0x12000, scoped, tag = 'internal scratch']
  %s0 = inlined_call_operand.vmem [shape: bf16[8,4], index: 0, kind: input, shape index: {}]
  %s1 = inlined_call_operand.vmem [shape: bf16[4,128], index: 1, kind: input, shape index: {}]
  %s2 = inlined_call_operand.vmem [shape: f32[1,128], index: 2, kind: input, shape index: {}]
  %s3 = inlined_call_operand.hbm [shape: bf16[128,128], index: 3, kind: input, shape index: {}]
  %s4 = inlined_call_operand.vmem [shape: f32[1,128], index: 4, kind: input, shape index: {}]
  %s5 = inlined_call_operand.hbm [shape: bf16[128,128], index: 5, kind: input, shape index: {}]
  %s6 = inlined_call_operand.vmem [shape: f32[1,128], index: 6, kind: input, shape index: {}]
  %s7 = inlined_call_operand.hbm [shape: bf16[128,128], index: 7, kind: input, shape index: {}]
  %s8 = inlined_call_operand.vmem [shape: f32[1,128], index: 8, kind: input, shape index: {}]
  %s9 = inlined_call_operand.hbm [shape: f32[8,128], index: 9, kind: output, shape index: {}]
  %s10 = sld [smem:[#allocation0]]
  $region58: #{tpu_custom_call.1} parent=0
    _
  %s12 = ssub.s32 1, %s10
  %s13 = scalar_select 0, %s12, %s10
  $region1: #{tpu_custom_call.1} parent=0
    #allocation2 [shape = 'u8[32768]{0}', space=vmem, size = 0x8000, scoped, tag = 'input window, operand 3, single buffered']
    #allocation3 [shape = 's32[1]{0}', space=sflag, size = 0x4, scoped, tag = 'scoped memory for tpu_custom_call.1']
    #allocation4 [shape = 's32[1]{0}', space=sflag, size = 0x4, scoped, tag = 'scoped memory for tpu_custom_call.1']
    #allocation5 [shape = 'u8[32768]{0}', space=vmem, size = 0x8000, scoped, tag = 'input window, operand 5, single buffered']
    #allocation6 [shape = 's32[1]{0}', space=sflag, size = 0x4, scoped, tag = 'scoped memory for tpu_custom_call.1']
    #allocation7 [shape = 'u8[32768]{0}', space=vmem, size = 0x8000, scoped, tag = 'input window, operand 7, single buffered']
    #allocation8 [shape = 'u8[4096]{0}', space=vmem, size = 0x1000, scoped, tag = 'output window, operand 0, single buffered']
    %14 = vsyncpa [#allocation3], 0
    %15 = vsyncpa [#allocation6], 0
    %16 = vsyncpa [#allocation4], 0
    // Predicated region
    $region2: #{tpu_custom_call.1} parent=1 // pred_check
      _
    $region3: #{tpu_custom_call.1} parent=1 // pred_check_branch
      %18 = sbr.rel (0) target = $region5
    $region4: #{tpu_custom_call.1} parent=1 // pred_region
      _
    $region5: #{tpu_custom_call.1} parent=1 // pred_fallthru
      _
    // Predicated region
    $region6: #{tpu_custom_call.1} parent=1 // pred_check
      _
    $region7: #{tpu_custom_call.1} parent=1 // pred_check_branch
      %20 = sbr.rel (0) target = $region9
    $region8: #{tpu_custom_call.1} parent=1 // pred_region
      _
    $region9: #{tpu_custom_call.1} parent=1 // pred_fallthru
      _
    // Predicated region
    $region10: #{tpu_custom_call.1} parent=1 // pred_check
      _
    $region11: #{tpu_custom_call.1} parent=1 // pred_check_branch
      %22 = sbr.rel (0) target = $region13
    $region12: #{tpu_custom_call.1} parent=1 // pred_region
      _
    $region13: #{tpu_custom_call.1} parent=1 // pred_fallthru
      _
    // Predicated region
    $region14: #{tpu_custom_call.1} parent=1 // pred_check
      _
    $region15: #{tpu_custom_call.1} parent=1 // pred_check_branch
      %24 = sbr.rel (0) target = $region17
    $region16: #{tpu_custom_call.1} parent=1 // pred_region
      %s26 = ssub.s32 1024, 1024
      %27 = vsyncadd [#allocation3], %s26
      %s28 = sshll.u32 [#allocation2], 4
      %s29 = int_to_ptr.vmem [resolvable:$true] %s28
      %34 = dma.hbm_to_vmem [thread:$0]  %s3, 1024, %s29, [#allocation3], 64, 64, 4
    $region17: #{tpu_custom_call.1} parent=1 // pred_fallthru
      _
    // Predicated region
    $region18: #{tpu_custom_call.1} parent=1 // pred_check
      _
    $region19: #{tpu_custom_call.1} parent=1 // pred_check_branch
      %36 = sbr.rel (0) target = $region21
    $region20: #{tpu_custom_call.1} parent=1 // pred_region
      _
    $region21: #{tpu_custom_call.1} parent=1 // pred_fallthru
      _
    // Predicated region
    $region22: #{tpu_custom_call.1} parent=1 // pred_check
      _
    $region23: #{tpu_custom_call.1} parent=1 // pred_check_branch
      %38 = sbr.rel (0) target = $region25
    $region24: #{tpu_custom_call.1} parent=1 // pred_region
      %s40 = ssub.s32 1024, 1024
      %41 = vsyncadd [#allocation6], %s40
      %s42 = sshll.u32 [#allocation5], 4
      %s43 = int_to_ptr.vmem [resolvable:$true] %s42
      %48 = dma.hbm_to_vmem [thread:$0]  %s5, 1024, %s43, [#allocation6], 64, 64, 4
    $region25: #{tpu_custom_call.1} parent=1 // pred_fallthru
      _
    // Predicated region
    $region26: #{tpu_custom_call.1} parent=1 // pred_check
      _
    $region27: #{tpu_custom_call.1} parent=1 // pred_check_branch
      %50 = sbr.rel (0) target = $region29
    $region28: #{tpu_custom_call.1} parent=1 // pred_region
      _
    $region29: #{tpu_custom_call.1} parent=1 // pred_fallthru
      _
    // Predicated region
    $region30: #{tpu_custom_call.1} parent=1 // pred_check
      _
    $region31: #{tpu_custom_call.1} parent=1 // pred_check_branch
      %52 = sbr.rel (0) target = $region33
    $region32: #{tpu_custom_call.1} parent=1 // pred_region
      %s54 = ssub.s32 1024, 1024
      %55 = vsyncadd [#allocation6], %s54
      %s56 = sshll.u32 [#allocation7], 4
      %s57 = int_to_ptr.vmem [resolvable:$true] %s56
      %62 = dma.hbm_to_vmem [thread:$0]  %s7, 1024, %s57, [#allocation6], 64, 64, 4
    $region33: #{tpu_custom_call.1} parent=1 // pred_fallthru
      _
    // Predicated region
    $region34: #{tpu_custom_call.1} parent=1 // pred_check
      _
    $region35: #{tpu_custom_call.1} parent=1 // pred_check_branch
      %64 = sbr.rel (0) target = $region37
    $region36: #{tpu_custom_call.1} parent=1 // pred_region
      _
    $region37: #{tpu_custom_call.1} parent=1 // pred_fallthru
      _
    // Predicated region
    $region38: #{tpu_custom_call.1} parent=1 // pred_check
      _
    $region39: #{tpu_custom_call.1} parent=1 // pred_check_branch
      %66 = sbr.rel (0) target = $region41
    $region40: #{tpu_custom_call.1} parent=1 // pred_region
      %67 = dma.done [#allocation3], 1024
    $region41: #{tpu_custom_call.1} parent=1 // pred_fallthru
      _
    // Predicated region
    $region42: #{tpu_custom_call.1} parent=1 // pred_check
      _
    $region43: #{tpu_custom_call.1} parent=1 // pred_check_branch
      %69 = sbr.rel (0) target = $region45
    $region44: #{tpu_custom_call.1} parent=1 // pred_region
      %70 = dma.done [#allocation6], 1024
    $region45: #{tpu_custom_call.1} parent=1 // pred_fallthru
      _
    // Predicated region
    $region46: #{tpu_custom_call.1} parent=1 // pred_check
      _
    $region47: #{tpu_custom_call.1} parent=1 // pred_check_branch
      %72 = sbr.rel (0) target = $region49
    $region48: #{tpu_custom_call.1} parent=1 // pred_region
      %73 = dma.done [#allocation6], 1024
    $region49: #{tpu_custom_call.1} parent=1 // pred_fallthru
      _
    %v75 = vld [vmem:[%s2] sm:$0x1]
    %v76 = vld [vmem:[%s4] sm:$0x1]
    %v77 = vld [vmem:[%s6] sm:$0x1]
    %v78 = vld [vmem:[%s8] sm:$0x1]
    %v79 = vld [vmem:[%s0] sm:$0xf]
    %v80 = vld [vmem:[%s1] sm:$0x3]
    %v82 = vlaneseq
    %v83 = vshrl.u32 %v82, 7
    %v84 = vsub.s32 0, %v83
    %v85 = vrot.slane %v75, %v84
    %vm87 = vcmask 31744
    %v89 = vsel %vm87, %v79, 0
    %vm91 = vcmask 1041408
    %v93 = vsel %vm91, %v80, 0
    %95 = vmatprep.subr.bf16.mxu0 0
    %96 = vmatpush1.bf16.msra.mxu0 %v93
    %97 = vmatprep.subr.bf16.mxu0 0
    %98 = vmatpush1.bf16.msra.mxu0 0
    %99 = vmatprep.subr.bf16.mxu0 0
    %100 = vmatpush1.bf16.msra.mxu0 0
    %101 = vmatprep.subr.bf16.mxu0 0
    %102 = vmatpush1.bf16.msra.mxu0 0
    %103 = vmatprep.subr.bf16.mxu0 0
    %104 = vmatpush1.bf16.msra.mxu0 0
    %105 = vmatprep.subr.bf16.mxu0 0
    %106 = vmatpush1.bf16.msra.mxu0 0
    %107 = vmatprep.subr.bf16.mxu0 0
    %108 = vmatpush1.bf16.msra.mxu0 0
    %109 = vmatprep.subr.bf16.mxu0 0
    %110 = vmatpush1.bf16.msra.mxu0 0
    %111 = vmatprep.subr.bf16.mxu0 0
    %112 = vmatpush1.bf16.msra.mxu0 0
    %113 = vmatprep.subr.bf16.mxu0 0
    %114 = vmatpush1.bf16.msra.mxu0 0
    %115 = vmatprep.subr.bf16.mxu0 0
    %116 = vmatpush1.bf16.msra.mxu0 0
    %117 = vmatprep.subr.bf16.mxu0 0
    %118 = vmatpush1.bf16.msra.mxu0 0
    %119 = vmatprep.subr.bf16.mxu0 0
    %120 = vmatpush1.bf16.msra.mxu0 0
    %121 = vmatprep.subr.bf16.mxu0 0
    %122 = vmatpush1.bf16.msra.mxu0 0
    %123 = vmatprep.subr.bf16.mxu0 0
    %124 = vmatpush1.bf16.msra.mxu0 0
    %125 = vmatprep.subr.bf16.mxu0 0
    %126 = vmatpush1.bf16.msra.mxu0 0
    %127 = vmatprep.mubr.bf16.mxu0 0
    %128 = vmatmul.mubr.bf16.gmra.mrb[0].mxu0 %v89
    %v129 = vpop.f32.mrb[0].mxu0
    %v130 = vadd.f32 %v85, %v129
    %v131 = vpop.f32.mrb[0].mxu0
    %v132 = vpop.f32.mrb[0].mxu0
    %v133 = vpop.f32.mrb[0].mxu0
    %134 = vdwg.mxu0
    %v135 = vmax.f32 %v130, 0.0
    %v136 = vpack.c.bf16 %v135, %v135
    %v137 = vld [vmem:[#allocation2] sm:$0xf]
    %v138 = vld [vmem:[#allocation2 + $0x4] sm:$0xf]
    %v139 = vld [vmem:[#allocation2 + $0x8] sm:$0xf]
    %v140 = vld [vmem:[#allocation2 + $0xc] sm:$0xf]
    %v141 = vld [vmem:[#allocation2 + $0x10] sm:$0xf]
    %v142 = vld [vmem:[#allocation2 + $0x14] sm:$0xf]
    %v143 = vld [vmem:[#allocation2 + $0x18] sm:$0xf]
    %v144 = vld [vmem:[#allocation2 + $0x1c] sm:$0xf]
    %v145 = vld [vmem:[#allocation2 + $0x20] sm:$0xf]
    %v146 = vld [vmem:[#allocation2 + $0x24] sm:$0xf]
    %v147 = vld [vmem:[#allocation2 + $0x28] sm:$0xf]
    %v148 = vld [vmem:[#allocation2 + $0x2c] sm:$0xf]
    %v149 = vld [vmem:[#allocation2 + $0x30] sm:$0xf]
    %v150 = vld [vmem:[#allocation2 + $0x34] sm:$0xf]
    %v151 = vld [vmem:[#allocation2 + $0x38] sm:$0xf]
    %v152 = vld [vmem:[#allocation2 + $0x3c] sm:$0xf]
    %v154 = vlaneseq
    %v155 = vshrl.u32 %v154, 7
    %v156 = vsub.s32 0, %v155
    %v157 = vrot.slane %v76, %v156
    %v175 = vunpack.c.l.b16 %v137
    %v176 = vunpack.c.l.b16 %v138
    %v177 = vunpack.c.l.b16 %v139
    %v178 = vunpack.c.l.b16 %v140
    %v179 = vunpack.c.l.b16 %v141
    %v180 = vunpack.c.l.b16 %v142
    %v181 = vunpack.c.l.b16 %v143
    %v182 = vunpack.c.l.b16 %v144
    %v183 = vunpack.c.l.b16 %v145
    %v184 = vunpack.c.l.b16 %v146
    %v185 = vunpack.c.l.b16 %v147
    %v186 = vunpack.c.l.b16 %v148
    %v187 = vunpack.c.l.b16 %v149
    %v188 = vunpack.c.l.b16 %v150
    %v189 = vunpack.c.l.b16 %v151
    %v190 = vunpack.c.l.b16 %v152
    %v191 = vpack.c.b16 %v176, %v175
    %v192 = vpack.c.b16 %v178, %v177
    %v193 = vpack.c.b16 %v180, %v179
    %v194 = vpack.c.b16 %v182, %v181
    %v195 = vpack.c.b16 %v184, %v183
    %v196 = vpack.c.b16 %v186, %v185
    %v197 = vpack.c.b16 %v188, %v187
    %v198 = vpack.c.b16 %v190, %v189
    %207 = vmatprep.subr.bf16.mxu0 0
    %208 = vmatpush1.bf16.msra.mxu0 %v191
    %209 = vmatprep.subr.bf16.mxu0 0
    %210 = vmatpush1.bf16.msra.mxu0 %v192
    %211 = vmatprep.subr.bf16.mxu0 0
    %212 = vmatpush1.bf16.msra.mxu0 %v193
    %213 = vmatprep.subr.bf16.mxu0 0
    %214 = vmatpush1.bf16.msra.mxu0 %v194
    %215 = vmatprep.subr.bf16.mxu0 0
    %216 = vmatpush1.bf16.msra.mxu0 %v195
    %217 = vmatprep.subr.bf16.mxu0 0
    %218 = vmatpush1.bf16.msra.mxu0 %v196
    %219 = vmatprep.subr.bf16.mxu0 0
    %220 = vmatpush1.bf16.msra.mxu0 %v197
    %221 = vmatprep.subr.bf16.mxu0 0
    %222 = vmatpush1.bf16.msra.mxu0 %v198
    %223 = vmatprep.subr.bf16.mxu0 0
    %224 = vmatpush1.bf16.msra.mxu0 0
    %225 = vmatprep.subr.bf16.mxu0 0
    %226 = vmatpush1.bf16.msra.mxu0 0
    %227 = vmatprep.subr.bf16.mxu0 0
    %228 = vmatpush1.bf16.msra.mxu0 0
    %229 = vmatprep.subr.bf16.mxu0 0
    %230 = vmatpush1.bf16.msra.mxu0 0
    %231 = vmatprep.subr.bf16.mxu0 0
    %232 = vmatpush1.bf16.msra.mxu0 0
    %233 = vmatprep.subr.bf16.mxu0 0
    %234 = vmatpush1.bf16.msra.mxu0 0
    %235 = vmatprep.subr.bf16.mxu0 0
    %236 = vmatpush1.bf16.msra.mxu0 0
    %237 = vmatprep.subr.bf16.mxu0 0
    %238 = vmatpush1.bf16.msra.mxu0 0
    %239 = vmatprep.mubr.bf16.mxu0 0
    %240 = vmatmul.mubr.bf16.gmra.mrb[0].mxu0 %v136
    %v241 = vpop.f32.mrb[0].mxu0
    %v242 = vadd.f32 %v157, %v241
    %v243 = vpop.f32.mrb[0].mxu0
    %v244 = vpop.f32.mrb[0].mxu0
    %v245 = vpop.f32.mrb[0].mxu0
    %246 = vdwg.mxu0
    %v247 = vmax.f32 %v242, 0.0
    %v248 = vpack.c.bf16 %v247, %v247
    %v249 = vld [vmem:[#allocation5] sm:$0xf]
    %v250 = vld [vmem:[#allocation5 + $0x4] sm:$0xf]
    %v251 = vld [vmem:[#allocation5 + $0x8] sm:$0xf]
    %v252 = vld [vmem:[#allocation5 + $0xc] sm:$0xf]
    %v253 = vld [vmem:[#allocation5 + $0x10] sm:$0xf]
    %v254 = vld [vmem:[#allocation5 + $0x14] sm:$0xf]
    %v255 = vld [vmem:[#allocation5 + $0x18] sm:$0xf]
    %v256 = vld [vmem:[#allocation5 + $0x1c] sm:$0xf]
    %v257 = vld [vmem:[#allocation5 + $0x20] sm:$0xf]
    %v258 = vld [vmem:[#allocation5 + $0x24] sm:$0xf]
    %v259 = vld [vmem:[#allocation5 + $0x28] sm:$0xf]
    %v260 = vld [vmem:[#allocation5 + $0x2c] sm:$0xf]
    %v261 = vld [vmem:[#allocation5 + $0x30] sm:$0xf]
    %v262 = vld [vmem:[#allocation5 + $0x34] sm:$0xf]
    %v263 = vld [vmem:[#allocation5 + $0x38] sm:$0xf]
    %v264 = vld [vmem:[#allocation5 + $0x3c] sm:$0xf]
    %v266 = vlaneseq
    %v267 = vshrl.u32 %v266, 7
    %v268 = vsub.s32 0, %v267
    %v269 = vrot.slane %v77, %v268
    %v287 = vunpack.c.l.b16 %v249
    %v288 = vunpack.c.l.b16 %v250
    %v289 = vunpack.c.l.b16 %v251
    %v290 = vunpack.c.l.b16 %v252
    %v291 = vunpack.c.l.b16 %v253
    %v292 = vunpack.c.l.b16 %v254
    %v293 = vunpack.c.l.b16 %v255
    %v294 = vunpack.c.l.b16 %v256
    %v295 = vunpack.c.l.b16 %v257
    %v296 = vunpack.c.l.b16 %v258
    %v297 = vunpack.c.l.b16 %v259
    %v298 = vunpack.c.l.b16 %v260
    %v299 = vunpack.c.l.b16 %v261
    %v300 = vunpack.c.l.b16 %v262
    %v301 = vunpack.c.l.b16 %v263
    %v302 = vunpack.c.l.b16 %v264
    %v303 = vpack.c.b16 %v288, %v287
    %v304 = vpack.c.b16 %v290, %v289
    %v305 = vpack.c.b16 %v292, %v291
    %v306 = vpack.c.b16 %v294, %v293
    %v307 = vpack.c.b16 %v296, %v295
    %v308 = vpack.c.b16 %v298, %v297
    %v309 = vpack.c.b16 %v300, %v299
    %v310 = vpack.c.b16 %v302, %v301
    %319 = vmatprep.subr.bf16.mxu0 0
    %320 = vmatpush1.bf16.msra.mxu0 %v303
    %321 = vmatprep.subr.bf16.mxu0 0
    %322 = vmatpush1.bf16.msra.mxu0 %v304
    %323 = vmatprep.subr.bf16.mxu0 0
    %324 = vmatpush1.bf16.msra.mxu0 %v305
    %325 = vmatprep.subr.bf16.mxu0 0
    %326 = vmatpush1.bf16.msra.mxu0 %v306
    %327 = vmatprep.subr.bf16.mxu0 0
    %328 = vmatpush1.bf16.msra.mxu0 %v307
    %329 = vmatprep.subr.bf16.mxu0 0
    %330 = vmatpush1.bf16.msra.mxu0 %v308
    %331 = vmatprep.subr.bf16.mxu0 0
    %332 = vmatpush1.bf16.msra.mxu0 %v309
    %333 = vmatprep.subr.bf16.mxu0 0
    %334 = vmatpush1.bf16.msra.mxu0 %v310
    %335 = vmatprep.subr.bf16.mxu0 0
    %336 = vmatpush1.bf16.msra.mxu0 0
    %337 = vmatprep.subr.bf16.mxu0 0
    %338 = vmatpush1.bf16.msra.mxu0 0
    %339 = vmatprep.subr.bf16.mxu0 0
    %340 = vmatpush1.bf16.msra.mxu0 0
    %341 = vmatprep.subr.bf16.mxu0 0
    %342 = vmatpush1.bf16.msra.mxu0 0
    %343 = vmatprep.subr.bf16.mxu0 0
    %344 = vmatpush1.bf16.msra.mxu0 0
    %345 = vmatprep.subr.bf16.mxu0 0
    %346 = vmatpush1.bf16.msra.mxu0 0
    %347 = vmatprep.subr.bf16.mxu0 0
    %348 = vmatpush1.bf16.msra.mxu0 0
    %349 = vmatprep.subr.bf16.mxu0 0
    %350 = vmatpush1.bf16.msra.mxu0 0
    %351 = vmatprep.mubr.bf16.mxu0 0
    %352 = vmatmul.mubr.bf16.gmra.mrb[0].mxu0 %v248
    %v353 = vpop.f32.mrb[0].mxu0
    %v354 = vadd.f32 %v269, %v353
    %v355 = vpop.f32.mrb[0].mxu0
    %v356 = vpop.f32.mrb[0].mxu0
    %v357 = vpop.f32.mrb[0].mxu0
    %358 = vdwg.mxu0
    %v359 = vmax.f32 %v354, 0.0
    %v360 = vpack.c.bf16 %v359, %v359
    %v361 = vld [vmem:[#allocation7] sm:$0xf]
    %v362 = vld [vmem:[#allocation7 + $0x4] sm:$0xf]
    %v363 = vld [vmem:[#allocation7 + $0x8] sm:$0xf]
    %v364 = vld [vmem:[#allocation7 + $0xc] sm:$0xf]
    %v365 = vld [vmem:[#allocation7 + $0x10] sm:$0xf]
    %v366 = vld [vmem:[#allocation7 + $0x14] sm:$0xf]
    %v367 = vld [vmem:[#allocation7 + $0x18] sm:$0xf]
    %v368 = vld [vmem:[#allocation7 + $0x1c] sm:$0xf]
    %v369 = vld [vmem:[#allocation7 + $0x20] sm:$0xf]
    %v370 = vld [vmem:[#allocation7 + $0x24] sm:$0xf]
    %v371 = vld [vmem:[#allocation7 + $0x28] sm:$0xf]
    %v372 = vld [vmem:[#allocation7 + $0x2c] sm:$0xf]
    %v373 = vld [vmem:[#allocation7 + $0x30] sm:$0xf]
    %v374 = vld [vmem:[#allocation7 + $0x34] sm:$0xf]
    %v375 = vld [vmem:[#allocation7 + $0x38] sm:$0xf]
    %v376 = vld [vmem:[#allocation7 + $0x3c] sm:$0xf]
    %v378 = vlaneseq
    %v379 = vshrl.u32 %v378, 7
    %v380 = vsub.s32 0, %v379
    %v381 = vrot.slane %v78, %v380
    %v399 = vunpack.c.l.b16 %v361
    %v400 = vunpack.c.l.b16 %v362
    %v401 = vunpack.c.l.b16 %v363
    %v402 = vunpack.c.l.b16 %v364
    %v403 = vunpack.c.l.b16 %v365
    %v404 = vunpack.c.l.b16 %v366
    %v405 = vunpack.c.l.b16 %v367
    %v406 = vunpack.c.l.b16 %v368
    %v407 = vunpack.c.l.b16 %v369
    %v408 = vunpack.c.l.b16 %v370
    %v409 = vunpack.c.l.b16 %v371
    %v410 = vunpack.c.l.b16 %v372
    %v411 = vunpack.c.l.b16 %v373
    %v412 = vunpack.c.l.b16 %v374
    %v413 = vunpack.c.l.b16 %v375
    %v414 = vunpack.c.l.b16 %v376
    %v415 = vpack.c.b16 %v400, %v399
    %v416 = vpack.c.b16 %v402, %v401
    %v417 = vpack.c.b16 %v404, %v403
    %v418 = vpack.c.b16 %v406, %v405
    %v419 = vpack.c.b16 %v408, %v407
    %v420 = vpack.c.b16 %v410, %v409
    %v421 = vpack.c.b16 %v412, %v411
    %v422 = vpack.c.b16 %v414, %v413
    %431 = vmatprep.subr.bf16.mxu0 0
    %432 = vmatpush1.bf16.msra.mxu0 %v415
    %433 = vmatprep.subr.bf16.mxu0 0
    %434 = vmatpush1.bf16.msra.mxu0 %v416
    %435 = vmatprep.subr.bf16.mxu0 0
    %436 = vmatpush1.bf16.msra.mxu0 %v417
    %437 = vmatprep.subr.bf16.mxu0 0
    %438 = vmatpush1.bf16.msra.mxu0 %v418
    %439 = vmatprep.subr.bf16.mxu0 0
    %440 = vmatpush1.bf16.msra.mxu0 %v419
    %441 = vmatprep.subr.bf16.mxu0 0
    %442 = vmatpush1.bf16.msra.mxu0 %v420
    %443 = vmatprep.subr.bf16.mxu0 0
    %444 = vmatpush1.bf16.msra.mxu0 %v421
    %445 = vmatprep.subr.bf16.mxu0 0
    %446 = vmatpush1.bf16.msra.mxu0 %v422
    %447 = vmatprep.subr.bf16.mxu0 0
    %448 = vmatpush1.bf16.msra.mxu0 0
    %449 = vmatprep.subr.bf16.mxu0 0
    %450 = vmatpush1.bf16.msra.mxu0 0
    %451 = vmatprep.subr.bf16.mxu0 0
    %452 = vmatpush1.bf16.msra.mxu0 0
    %453 = vmatprep.subr.bf16.mxu0 0
    %454 = vmatpush1.bf16.msra.mxu0 0
    %455 = vmatprep.subr.bf16.mxu0 0
    %456 = vmatpush1.bf16.msra.mxu0 0
    %457 = vmatprep.subr.bf16.mxu0 0
    %458 = vmatpush1.bf16.msra.mxu0 0
    %459 = vmatprep.subr.bf16.mxu0 0
    %460 = vmatpush1.bf16.msra.mxu0 0
    %461 = vmatprep.subr.bf16.mxu0 0
    %462 = vmatpush1.bf16.msra.mxu0 0
    %463 = vmatprep.mubr.bf16.mxu0 0
    %464 = vmatmul.mubr.bf16.gmra.mrb[0].mxu0 %v360
    %v465 = vpop.f32.mrb[0].mxu0
    %v466 = vadd.f32 %v381, %v465
    %v467 = vpop.f32.mrb[0].mxu0
    %v468 = vpop.f32.mrb[0].mxu0
    %v469 = vpop.f32.mrb[0].mxu0
    %470 = vdwg.mxu0
    %v471 = vmax.f32 %v466, 0.0
    %472 = vst [vmem:[#allocation8] sm:$0xff] %v471
    // Predicated region
    $region50: #{tpu_custom_call.1} parent=1 // pred_check
      _
    $region51: #{tpu_custom_call.1} parent=1 // pred_check_branch
      %474 = sbr.rel (0) target = $region53
    $region52: #{tpu_custom_call.1} parent=1 // pred_region
      %s476 = ssub.s32 128, 128
      %477 = vsyncadd [#allocation4], %s476
      %s479 = sshll.u32 [#allocation8], 4
      %s480 = int_to_ptr.vmem [resolvable:$true] %s479
      %482 = dma.vmem_to_hbm [thread:$0]  %s480, 128, %s9, [#allocation4]
    $region53: #{tpu_custom_call.1} parent=1 // pred_fallthru
      _
    // Predicated region
    $region54: #{tpu_custom_call.1} parent=1 // pred_check
      _
    $region55: #{tpu_custom_call.1} parent=1 // pred_check_branch
      %484 = sbr.rel (0) target = $region57
    $region56: #{tpu_custom_call.1} parent=1 // pred_region
      %485 = dma.done [#allocation4], 128
    $region57: #{tpu_custom_call.1} parent=1 // pred_fallthru
      _
    %486 = vsyncpa [#allocation3], 1
    %487 = vsyncpa [#allocation6], 1
    %488 = vsyncpa [#allocation4], 1

</llo_original>
